<compile_context>
chip_gen: v6e
topology: v6e:2x2x1
jax: 0.10.0
libtpu: 0.0.40
codegen_flags: <defaults>
</compile_context>

<pallas_src>
from functools import partial

import jax
import jax.numpy as jnp
import numpy as np
from jax import lax
from jax.experimental import pallas as pl
from jax.experimental.pallas import tpu as pltpu


# ---------------------------------------------------------------------------
# Kernels
# ---------------------------------------------------------------------------

def _l1_kernel_dense(out_ref, lab_ref, res_ref, sum_acc, cnt_acc, *,
                     rows, block_rows, ignore_index, normalize, needs_bounds):
    """Blocks are (C, S, 128); accumulators are (S, 128) f32."""
    j = pl.program_id(2)
    n_j = pl.num_programs(2)

    @pl.when(j == 0)
    def _():
        sum_acc[...] = jnp.zeros_like(sum_acc)
        cnt_acc[...] = jnp.zeros_like(cnt_acc)

    out = out_ref[...].astype(jnp.float32)   # (C, S, 128)
    lab = lab_ref[...].astype(jnp.float32)   # (C, S, 128)

    # valid pixel <=> no channel equals ignore_index (and inside the un-padded
    # spatial extent when the last block is partial).
    valid = jnp.all(lab != ignore_index, axis=0)                     # (S, 128) bool
    if needs_bounds:
        g = pl.program_id(1) * n_j + j                               # global block idx
        row_ids = g * block_rows + lax.broadcasted_iota(
            jnp.int32, (block_rows, 128), 0)
        valid = jnp.logical_and(valid, row_ids < rows)

    if normalize:
        # F.normalize(out, p=2, dim=1): x / max(||x||, 1e-12)
        #   == x * rsqrt(max(||x||^2, 1e-24))   (rsqrt -> idle EUP slot)
        sumsq = jnp.sum(out * out, axis=0)                           # (S, 128)
        out = out * lax.rsqrt(jnp.maximum(sumsq, 1e-24))[None, :, :]

    # where (not multiply) so unspecified data in padded tail blocks can't
    # poison the accumulator with NaN/Inf.
    diff = jnp.where(valid[None, :, :], jnp.abs(out - lab), 0.0)     # (C, S, 128)

    sum_acc[...] += jnp.sum(diff, axis=0)          # channel-reduce first (small acc)
    cnt_acc[...] += valid.astype(jnp.float32)

    @pl.when(j == n_j - 1)
    def _():
        row = lax.broadcasted_iota(jnp.int32, (8, 128), 0)
        # row 0 -> total |diff| sum, other rows -> valid-pixel count.
        res_ref[...] = jnp.where(row == 0, jnp.sum(sum_acc[...]),
                                 jnp.sum(cnt_acc[...]))


def _l1_kernel_flat(out_ref, lab_ref, res_ref, sum_acc, cnt_acc, *,
                    n_pix, block_lanes, ignore_index, normalize, needs_bounds):
    """Fallback when H*W is not a multiple of 128.  Blocks are (C, T)."""
    j = pl.program_id(1)
    n_j = pl.num_programs(1)

    @pl.when(j == 0)
    def _():
        sum_acc[...] = jnp.zeros_like(sum_acc)
        cnt_acc[...] = jnp.zeros_like(cnt_acc)

    out = out_ref[...].astype(jnp.float32)   # (C, T)
    lab = lab_ref[...].astype(jnp.float32)   # (C, T)

    valid = jnp.all(lab != ignore_index, axis=0, keepdims=True)      # (1, T)
    if needs_bounds:
        pos = j * block_lanes + lax.broadcasted_iota(
            jnp.int32, (1, block_lanes), 1)
        valid = jnp.logical_and(valid, pos < n_pix)

    if normalize:
        sumsq = jnp.sum(out * out, axis=0, keepdims=True)            # (1, T)
        out = out * lax.rsqrt(jnp.maximum(sumsq, 1e-24))

    diff = jnp.where(valid, jnp.abs(out - lab), 0.0)                 # (C, T)

    sum_acc[...] += jnp.sum(diff, axis=0, keepdims=True)             # (1, T)
    cnt_acc[...] += valid.astype(jnp.float32)

    @pl.when(j == n_j - 1)
    def _():
        row = lax.broadcasted_iota(jnp.int32, (8, 128), 0)
        res_ref[...] = jnp.where(row == 0, jnp.sum(sum_acc[...]),
                                 jnp.sum(cnt_acc[...]))


# ---------------------------------------------------------------------------
# Block-size selection (dtype-aware, VMEM-budgeted)
# ---------------------------------------------------------------------------

def _choose_block_rows(C, R, in_itemsize, budget_bytes, max_rows):
    """Rows-of-128-lanes per block for the dense (C, S, 128) layout."""
    # 2 inputs x 2 pipeline buffers x C*128*itemsize + 2 f32 (S,128) scratch.
    per_row = 4 * C * 128 * in_itemsize + 2 * 128 * 4
    cap = max(8, budget_bytes // per_row)
    cap = min(int(cap), int(max_rows))
    if R <= cap:
        return R                      # full extent is always a legal block dim
    return max(8, (cap // 8) * 8)


def _choose_block_lanes(C, P, in_itemsize, budget_bytes, max_lanes):
    """Lane-tile for the flat (C, T) fallback layout."""
    per_lane = 4 * C * in_itemsize + 2 * 4
    cap = max(128, budget_bytes // per_lane)
    cap = min(int(cap), int(max_lanes))
    if P <= cap:
        return P
    return max(128, (cap // 128) * 128)


# ---------------------------------------------------------------------------
# Wrapper
# ---------------------------------------------------------------------------

def l1_loss_pallas(out, label, reduction="mean", normalize=False,
                   ignore_index=255, vmem_budget_bytes=20 << 20,
                   max_block_rows=2048, max_block_lanes=262144):
    """L1 loss with ignore regions (ATRC), matching the PyTorch L1Loss module.

    out, label: (N, C, H, W) arrays (any float dtype; compute is f32).
    """
    assert out.shape == label.shape
    N, C, H, W = out.shape
    P = H * W
    itemsize = max(jnp.dtype(out.dtype).itemsize, jnp.dtype(label.dtype).itemsize)

    bytes_in = out.size * out.dtype.itemsize + label.size * label.dtype.itemsize
    cost = pl.CostEstimate(
        flops=int((7 if normalize else 5) * N * C * P),
        transcendentals=int(N * P) if normalize else 0,
        bytes_accessed=int(bytes_in + 2 * N * 8 * 128 * 4),
    )
    vmem_limit = 32 << 20   # explicit: covers v5e's 16 MiB scoped default,
                            # well under v7x's 64 MiB physical VMEM.

    if P % 128 == 0:
        # -------- dense-sublane path: (N, C, R, 128), blocks (C, S, 128) -----
        R = P // 128
        out3 = out.reshape(N, C, R, 128)      # metadata-only reshapes
        lab3 = label.reshape(N, C, R, 128)

        S = _choose_block_rows(C, R, itemsize, vmem_budget_bytes, max_block_rows)
        n_blocks = -(-R // S)
        # v7x: both TensorCores busy even when N == 1 (only when it splits evenly).
        n_par = 2 if (N == 1 and n_blocks >= 2 and n_blocks % 2 == 0) else 1
        n_j = n_blocks // n_par
        needs_bounds = (R % S) != 0

        kernel = partial(_l1_kernel_dense, rows=R, block_rows=S,
                         ignore_index=float(ignore_index),
                         normalize=normalize, needs_bounds=needs_bounds)

        res = pl.pallas_call(
            kernel,
            out_shape=jax.ShapeDtypeStruct((N, n_par, 8, 128), jnp.float32),
            grid_spec=pltpu.PrefetchScalarGridSpec(
                num_scalar_prefetch=0,
                grid=(N, n_par, n_j),
                in_specs=[pl.BlockSpec((None, C, S, 128),
                                       lambda i, p, j: (i, 0, p * n_j + j, 0)),
                          pl.BlockSpec((None, C, S, 128),
                                       lambda i, p, j: (i, 0, p * n_j + j, 0))],
                out_specs=pl.BlockSpec((None, None, 8, 128),
                                       lambda i, p, j: (i, p, 0, 0)),
                scratch_shapes=[pltpu.VMEM((S, 128), jnp.float32),
                                pltpu.VMEM((S, 128), jnp.float32)],
            ),
            compiler_params=pltpu.CompilerParams(
                dimension_semantics=("parallel", "parallel", "arbitrary"),
                vmem_limit_bytes=vmem_limit),
            cost_estimate=cost,
        )(out3, lab3)

        total = jnp.sum(res[:, :, 0, 0])
        n_valid = jnp.sum(res[:, :, 1, 0])
    else:
        # -------- flat fallback: (N, C, P), blocks (C, T) --------------------
        out2 = out.reshape(N, C, P)
        lab2 = label.reshape(N, C, P)

        T = _choose_block_lanes(C, P, itemsize, vmem_budget_bytes, max_block_lanes)
        n_j = -(-P // T)
        needs_bounds = (P % T) != 0

        kernel = partial(_l1_kernel_flat, n_pix=P, block_lanes=T,
                         ignore_index=float(ignore_index),
                         normalize=normalize, needs_bounds=needs_bounds)

        res = pl.pallas_call(
            kernel,
            out_shape=jax.ShapeDtypeStruct((N, 8, 128), jnp.float32),
            grid_spec=pltpu.PrefetchScalarGridSpec(
                num_scalar_prefetch=0,
                grid=(N, n_j),
                in_specs=[pl.BlockSpec((None, C, T), lambda i, j: (i, 0, j)),
                          pl.BlockSpec((None, C, T), lambda i, j: (i, 0, j))],
                out_specs=pl.BlockSpec((None, 8, 128), lambda i, j: (i, 0, 0)),
                scratch_shapes=[pltpu.VMEM((1, T), jnp.float32),
                                pltpu.VMEM((1, T), jnp.float32)],
            ),
            compiler_params=pltpu.CompilerParams(
                dimension_semantics=("parallel", "arbitrary"),
                vmem_limit_bytes=vmem_limit),
            cost_estimate=cost,
        )(out2, lab2)

        total = jnp.sum(res[:, 0, 0])
        n_valid = jnp.sum(res[:, 1, 0])

    if reduction == "mean":
        # PyTorch module: sum / max(n_valid_pixels, 1)  (0 if no valid pixel).
        return total / jnp.maximum(n_valid, 1.0)
    elif reduction == "sum":
        return total
    elif reduction == "none":
        # TODO(synk): 'none' returns the ragged per-element |diff| of
        # masked_select (data-dependent shape); no clean static Pallas equivalent.
        raise NotImplementedError("reduction='none' not supported in Pallas port")
    else:
        raise ValueError(reduction)


# ---------------------------------------------------------------------------
# Pure-JAX reference (mirrors the PyTorch semantics)
# ---------------------------------------------------------------------------

def _l1_loss_ref(out, label, reduction="mean", normalize=False, ignore_index=255):
    out = out.astype(jnp.float32)
    label = label.astype(jnp.float32)
    if normalize:
        sumsq = jnp.sum(out * out, axis=1, keepdims=True)
        out = out * lax.rsqrt(jnp.maximum(sumsq, 1e-24))
    mask = jnp.all(label != ignore_index, axis=1, keepdims=True)   # (N,1,H,W)
    n_valid = jnp.sum(mask)
    diff = jnp.where(mask, jnp.abs(out - label), 0.0)
    s = jnp.sum(diff)
    if reduction == "mean":
        return s / jnp.maximum(n_valid.astype(jnp.float32), 1.0)
    return s


# ---------------------------------------------------------------------------
# Self-test
# ---------------------------------------------------------------------------

if __name__ == "__main__":
    key = jax.random.PRNGKey(0)
    k1, k2, k3, k4, k5, k6, k7, k8 = jax.random.split(key, 8)
    ignore_index = 255

    def check(o, l, rtol=1e-5, atol=1e-5, **kw):
        got = jax.block_until_ready(l1_loss_pallas(o, l, ignore_index=ignore_index, **kw))
        want = _l1_loss_ref(o, l, ignore_index=ignore_index,
                            **{k: v for k, v in kw.items()
                               if k in ("reduction", "normalize")})
        np.testing.assert_allclose(np.asarray(got), np.asarray(want),
                                   rtol=rtol, atol=atol)

    # Case 1: (2, 4, 16, 16), P % 128 == 0 (dense path), with ignore regions.
    N, C, H, W = 2, 4, 16, 16
    out = jax.random.normal(k1, (N, C, H, W), dtype=jnp.float32)
    label = jax.random.normal(k2, (N, C, H, W), dtype=jnp.float32)
    label = label.at[0, :, 12:, 8:].set(float(ignore_index))   # all-channel ignore patch
    label = label.at[1, 0, 0:2, 0:4].set(float(ignore_index))  # single-channel ignore
    for normalize in (False, True):
        for reduction in ("mean", "sum"):
            check(out, label, reduction=reduction, normalize=normalize)

    # Case 2: surface-normal style, C=3, normalize=True (dense path).
    outn = jax.random.normal(k3, (2, 3, 8, 16), dtype=jnp.float32)
    labn = jax.random.normal(k4, (2, 3, 8, 16), dtype=jnp.float32)
    labn = labn.at[1, :, 4:, :].set(float(ignore_index))
    check(outn, labn, reduction="mean", normalize=True)

    # Case 3: multi-block dense accumulation (force small row blocks).
    outm = jax.random.normal(k5, (2, 3, 32, 64), dtype=jnp.float32)
    labm = jax.random.normal(k6, (2, 3, 32, 64), dtype=jnp.float32)
    labm = labm.at[0, :, :, 40:].set(float(ignore_index))
    check(outm, labm, reduction="mean", normalize=True, max_block_rows=8)

    # Case 4: N == 1 -> exercises the spatial 'parallel' split (two chunks).
    out1 = jax.random.normal(k7, (1, 3, 32, 64), dtype=jnp.float32)
    lab1 = jax.random.normal(k8, (1, 3, 32, 64), dtype=jnp.float32)
    lab1 = lab1.at[0, :, 10:, :].set(float(ignore_index))
    check(out1, lab1, reduction="mean", normalize=False, max_block_rows=8)
    check(out1, lab1, reduction="sum", normalize=True, max_block_rows=8)

    # Case 5: flat fallback (P % 128 != 0), single and multi tile + ragged tail.
    outf = jax.random.normal(k1, (2, 4, 12, 10), dtype=jnp.float32)     # P=120
    labf = jax.random.normal(k2, (2, 4, 12, 10), dtype=jnp.float32)
    labf = labf.at[0, :, 6:, :].set(float(ignore_index))
    check(outf, labf, reduction="mean", normalize=False)
    outg = jax.random.normal(k3, (2, 4, 20, 15), dtype=jnp.float32)     # P=300
    labg = jax.random.normal(k4, (2, 4, 20, 15), dtype=jnp.float32)
    labg = labg.at[1, :, :, 10:].set(float(ignore_index))
    check(outg, labg, reduction="sum", normalize=True, max_block_lanes=128)

    # Case 6: bf16 inputs (dtype-aware tiling + in-kernel cast).
    outb = jax.random.normal(k5, (2, 4, 16, 16), dtype=jnp.bfloat16)
    labb = jax.random.normal(k6, (2, 4, 16, 16), dtype=jnp.bfloat16)
    labb = labb.at[0, :, 8:, :].set(float(ignore_index))
    check(outb, labb, reduction="mean", normalize=False, rtol=2e-2, atol=2e-2)

    print("KERNEL_OK")
</pallas_src>

<mosaic_0001>
module attributes {stable_mosaic.version = 11 : i64} {
  func.func @_l1_kernel_dense(%arg0: i32, %arg1: i32, %arg2: i32, %arg3: memref<1x4x2x128xf32, #tpu.memory_space<vmem>>, %arg4: memref<1x4x2x128xf32, #tpu.memory_space<vmem>>, %arg5: memref<1x1x8x128xf32, #tpu.memory_space<vmem>>, %arg6: memref<2x128xf32, #tpu.memory_space<vmem>>, %arg7: memref<2x128xf32, #tpu.memory_space<vmem>>) attributes {dimension_semantics = [#tpu.dimension_semantics<parallel>, #tpu.dimension_semantics<parallel>, #tpu.dimension_semantics<arbitrary>], iteration_bounds = array<i64: 2, 1, 1>, scalar_prefetch = 0 : i64, scratch_operands = 2 : i64, tpu.core_type = #tpu.core_type<tc>, window_params = [{transform_indices = @transform_0, window_bounds = array<i64: 1, 4, 2, 128>}, {transform_indices = @transform_1, window_bounds = array<i64: 1, 4, 2, 128>}, {transform_indices = @transform_2, window_bounds = array<i64: 1, 1, 8, 128>}]} {
    %c0_i32 = arith.constant 0 : i32
    %0 = arith.cmpi eq, %arg2, %c0_i32 : i32
    %1 = arith.extui %0 : i1 to i32
    %c0_i32_0 = arith.constant 0 : i32
    %2 = arith.cmpi ne, %1, %c0_i32_0 : i32
    scf.if %2 {
      %cst_24 = arith.constant 0.000000e+00 : f32
      %34 = vector.broadcast %cst_24 : f32 to vector<2x128xf32>
      %c0_25 = arith.constant 0 : index
      %c0_26 = arith.constant 0 : index
      %35 = vector.load %arg6[%c0_25, %c0_26] : memref<2x128xf32, #tpu.memory_space<vmem>>, vector<2x128xf32>
      tpu.vector_store %arg6[%c0_25, %c0_26], %34 {strides = array<i32>} : memref<2x128xf32, #tpu.memory_space<vmem>>, vector<2x128xf32>,
      %cst_27 = arith.constant 0.000000e+00 : f32
      %36 = vector.broadcast %cst_27 : f32 to vector<2x128xf32>
      %c0_28 = arith.constant 0 : index
      %c0_29 = arith.constant 0 : index
      %37 = vector.load %arg7[%c0_28, %c0_29] : memref<2x128xf32, #tpu.memory_space<vmem>>, vector<2x128xf32>
      tpu.vector_store %arg7[%c0_28, %c0_29], %36 {strides = array<i32>} : memref<2x128xf32, #tpu.memory_space<vmem>>, vector<2x128xf32>,
    } else {
    }
    %c0 = arith.constant 0 : index
    %c0_1 = arith.constant 0 : index
    %c0_2 = arith.constant 0 : index
    %c0_3 = arith.constant 0 : index
    %3 = vector.load %arg3[%c0, %c0_1, %c0_2, %c0_3] : memref<1x4x2x128xf32, #tpu.memory_space<vmem>>, vector<1x4x2x128xf32>
    %4 = vector.shape_cast %3 : vector<1x4x2x128xf32> to vector<4x2x128xf32>
    %c0_4 = arith.constant 0 : index
    %c0_5 = arith.constant 0 : index
    %c0_6 = arith.constant 0 : index
    %c0_7 = arith.constant 0 : index
    %5 = vector.load %arg4[%c0_4, %c0_5, %c0_6, %c0_7] : memref<1x4x2x128xf32, #tpu.memory_space<vmem>>, vector<1x4x2x128xf32>
    %6 = vector.shape_cast %5 : vector<1x4x2x128xf32> to vector<4x2x128xf32>
    %cst = arith.constant 2.550000e+02 : f32
    %7 = vector.broadcast %cst : f32 to vector<4x2x128xf32>
    %8 = arith.cmpf one, %6, %7 : vector<4x2x128xf32>
    %cst_8 = arith.constant 1.000000e+00 : f32
    %cst_9 = arith.constant 0.000000e+00 : f32
    %9 = vector.broadcast %cst_8 : f32 to vector<4x2x128xf32>
    %10 = vector.broadcast %cst_9 : f32 to vector<4x2x128xf32>
    %11 = arith.select %8, %9, %10 : vector<4x2x128xi1>, vector<4x2x128xf32>
    %cst_10 = arith.constant dense<0x7F800000> : vector<2x128xf32>
    %12 = vector.multi_reduction <minimumf>, %11, %cst_10 [0] : vector<4x2x128xf32> to vector<2x128xf32>
    %cst_11 = arith.constant 0.000000e+00 : f32
    %13 = vector.broadcast %cst_11 : f32 to vector<2x128xf32>
    %14 = arith.cmpf ogt, %12, %13 : vector<2x128xf32>
    %15 = vector.shape_cast %14 : vector<2x128xi1> to vector<1x2x128xi1>
    %16 = arith.subf %4, %6 : vector<4x2x128xf32>
    %17 = math.absf %16 : vector<4x2x128xf32>
    %cst_12 = arith.constant 0.000000e+00 : f32
    %18 = vector.shape_cast %15 : vector<1x2x128xi1> to vector<1x2x128xi1>
    %19 = vector.broadcast %18 : vector<1x2x128xi1> to vector<4x2x128xi1>
    %20 = vector.broadcast %cst_12 : f32 to vector<4x2x128xf32>
    %21 = arith.select %19, %17, %20 : vector<4x2x128xi1>, vector<4x2x128xf32>
    %c0_13 = arith.constant 0 : index
    %c0_14 = arith.constant 0 : index
    %22 = vector.load %arg6[%c0_13, %c0_14] : memref<2x128xf32, #tpu.memory_space<vmem>>, vector<2x128xf32>
    %cst_15 = arith.constant dense<0.000000e+00> : vector<2x128xf32>
    %23 = vector.multi_reduction <add>, %21, %cst_15 [0] : vector<4x2x128xf32> to vector<2x128xf32>
    %24 = arith.addf %22, %23 : vector<2x128xf32>
    %c0_16 = arith.constant 0 : index
    %c0_17 = arith.constant 0 : index
    %25 = vector.load %arg6[%c0_16, %c0_17] : memref<2x128xf32, #tpu.memory_space<vmem>>, vector<2x128xf32>
    tpu.vector_store %arg6[%c0_16, %c0_17], %24 {strides = array<i32>} : memref<2x128xf32, #tpu.memory_space<vmem>>, vector<2x128xf32>,
    %c0_18 = arith.constant 0 : index
    %c0_19 = arith.constant 0 : index
    %26 = vector.load %arg7[%c0_18, %c0_19] : memref<2x128xf32, #tpu.memory_space<vmem>>, vector<2x128xf32>
    %27 = arith.extui %14 : vector<2x128xi1> to vector<2x128xi32>
    %28 = arith.sitofp %27 : vector<2x128xi32> to vector<2x128xf32>
    %29 = arith.addf %26, %28 : vector<2x128xf32>
    %c0_20 = arith.constant 0 : index
    %c0_21 = arith.constant 0 : index
    %30 = vector.load %arg7[%c0_20, %c0_21] : memref<2x128xf32, #tpu.memory_space<vmem>>, vector<2x128xf32>
    tpu.vector_store %arg7[%c0_20, %c0_21], %29 {strides = array<i32>} : memref<2x128xf32, #tpu.memory_space<vmem>>, vector<2x128xf32>,
    %c0_i32_22 = arith.constant 0 : i32
    %31 = arith.cmpi eq, %arg2, %c0_i32_22 : i32
    %32 = arith.extui %31 : i1 to i32
    %c0_i32_23 = arith.constant 0 : i32
    %33 = arith.cmpi ne, %32, %c0_i32_23 : i32
    scf.if %33 {
      %34 = tpu.iota {dimensions = array<i32: 0>} : vector<8x128xi32>
      %c0_i32_24 = arith.constant 0 : i32
      %35 = vector.broadcast %c0_i32_24 : i32 to vector<8x128xi32>
      %36 = arith.cmpi eq, %34, %35 : vector<8x128xi32>
      %c0_25 = arith.constant 0 : index
      %c0_26 = arith.constant 0 : index
      %37 = vector.load %arg6[%c0_25, %c0_26] : memref<2x128xf32, #tpu.memory_space<vmem>>, vector<2x128xf32>
      %38 = vector.shape_cast %37 : vector<2x128xf32> to vector<1x2x128xf32>
      %cst_27 = arith.constant dense<0.000000e+00> : vector<1xf32>
      %39 = vector.multi_reduction <add>, %38, %cst_27 [1, 2] : vector<1x2x128xf32> to vector<1xf32>
      %40 = vector.shape_cast %39 : vector<1xf32> to vector<1x1x1xf32>
      %41 = vector.extract %40[0, 0, 0] : f32 from vector<1x1x1xf32>
      %c0_28 = arith.constant 0 : index
      %c0_29 = arith.constant 0 : index
      %42 = vector.load %arg7[%c0_28, %c0_29] : memref<2x128xf32, #tpu.memory_space<vmem>>, vector<2x128xf32>
      %43 = vector.shape_cast %42 : vector<2x128xf32> to vector<1x2x128xf32>
      %cst_30 = arith.constant dense<0.000000e+00> : vector<1xf32>
      %44 = vector.multi_reduction <add>, %43, %cst_30 [1, 2] : vector<1x2x128xf32> to vector<1xf32>
      %45 = vector.shape_cast %44 : vector<1xf32> to vector<1x1x1xf32>
      %46 = vector.extract %45[0, 0, 0] : f32 from vector<1x1x1xf32>
      %47 = vector.broadcast %41 : f32 to vector<8x128xf32>
      %48 = vector.broadcast %46 : f32 to vector<8x128xf32>
      %49 = arith.select %36, %47, %48 : vector<8x128xi1>, vector<8x128xf32>
      %c0_31 = arith.constant 0 : index
      %c0_32 = arith.constant 0 : index
      %c0_33 = arith.constant 0 : index
      %c0_34 = arith.constant 0 : index
      %50 = vector.load %arg5[%c0_31, %c0_32, %c0_33, %c0_34] : memref<1x1x8x128xf32, #tpu.memory_space<vmem>>, vector<1x1x8x128xf32>
      %51 = vector.shape_cast %50 : vector<1x1x8x128xf32> to vector<8x128xf32>
      %52 = vector.shape_cast %49 : vector<8x128xf32> to vector<1x1x8x128xf32>
      tpu.vector_store %arg5[%c0_31, %c0_32, %c0_33, %c0_34], %52 {strides = array<i32>} : memref<1x1x8x128xf32, #tpu.memory_space<vmem>>, vector<1x1x8x128xf32>,
    } else {
    }
    return
  }
  func.func @transform_0(%arg0: i32, %arg1: i32, %arg2: i32) -> (i32, i32, i32, i32) {
    %c1_i32 = arith.constant 1 : i32
    %0 = arith.muli %arg1, %c1_i32 : i32
    %1 = arith.addi %0, %arg2 : i32
    %c0_i32 = arith.constant 0 : i32
    %c0_i32_0 = arith.constant 0 : i32
    %c0_i32_1 = arith.constant 0 : i32
    return %arg0, %c0_i32, %1, %c0_i32_0 : i32, i32, i32, i32
  }
  func.func @transform_1(%arg0: i32, %arg1: i32, %arg2: i32) -> (i32, i32, i32, i32) {
    %c1_i32 = arith.constant 1 : i32
    %0 = arith.muli %arg1, %c1_i32 : i32
    %1 = arith.addi %0, %arg2 : i32
    %c0_i32 = arith.constant 0 : i32
    %c0_i32_0 = arith.constant 0 : i32
    %c0_i32_1 = arith.constant 0 : i32
    return %arg0, %c0_i32, %1, %c0_i32_0 : i32, i32, i32, i32
  }
  func.func @transform_2(%arg0: i32, %arg1: i32, %arg2: i32) -> (i32, i32, i32, i32) {
    %c0_i32 = arith.constant 0 : i32
    %c0_i32_0 = arith.constant 0 : i32
    %c0_i32_1 = arith.constant 0 : i32
    return %arg0, %arg1, %c0_i32, %c0_i32_0 : i32, i32, i32, i32
  }
}

</mosaic_0001>

<llo_original>
// kernel: tpu_custom_call.1
$region0: #{tpu_custom_call.1}
  #allocation0 [shape = 'u32[]', space=smem, size = 0x4, offset = 0x4, fixed_abs, tag = 'smem constant byte address 0x4 - core index']
  #allocation1 [shape = 'u32[144,128]{1,0:T(1,128)}', space=vmem, size = 0x12000, scoped, tag = 'internal scratch']
  #allocation2 [shape = 'f32[2,128]{1,0:T(2,128)}', space=vmem, size = 0x400, scoped, tag = 'scratch operand']
  #allocation3 [shape = 'f32[2,128]{1,0:T(2,128)}', space=vmem, size = 0x400, scoped, tag = 'scratch operand']
  %s0 = inlined_call_operand.hbm [shape: f32[2,4,2,128], index: 0, kind: input, shape index: {}]
  %s1 = inlined_call_operand.hbm [shape: f32[2,4,2,128], index: 1, kind: input, shape index: {}]
  %s2 = inlined_call_operand.hbm [shape: f32[2,1,8,128], index: 2, kind: output, shape index: {}]
  %s3 = sld [smem:[#allocation0]]
  $region57: #{tpu_custom_call.1} parent=0
    _
  %s5 = ssub.s32 1, %s3
  %s6 = scalar_select 0, %s5, %s3
  $region1: #{tpu_custom_call.1} parent=0
    #allocation4 [shape = 'u8[8192]{0}', space=vmem, size = 0x2000, scoped, tag = 'input window, operand 0']
    #allocation5 [shape = 's32[2]{0}', space=sflag, size = 0x8, scoped, tag = 'scoped memory for tpu_custom_call.1']
    #allocation6 [shape = 's32[2]{0}', space=sflag, size = 0x8, scoped, tag = 'scoped memory for tpu_custom_call.1']
    #allocation7 [shape = 'u8[8192]{0}', space=vmem, size = 0x2000, scoped, tag = 'input window, operand 1']
    #allocation8 [shape = 's32[2]{0}', space=sflag, size = 0x8, scoped, tag = 'scoped memory for tpu_custom_call.1']
    #allocation9 [shape = 'u8[8192]{0}', space=vmem, size = 0x2000, scoped, tag = 'output window, operand 0']
    %7 = vsyncpa [#allocation5], 0
    %s8 = scalar_lea.sflag [#allocation5], 1
    %9 = vsyncpa %s8, 0
    %10 = vsyncpa [#allocation8], 0
    %s11 = scalar_lea.sflag [#allocation8], 1
    %12 = vsyncpa %s11, 0
    %13 = vsyncpa [#allocation6], 0
    %s14 = scalar_lea.sflag [#allocation6], 1
    %15 = vsyncpa %s14, 0
    loop: start=0, step=1, limit=4
    $region2: #{tpu_custom_call.1} parent=1 // loop_pre_header
      _
    $region3: #{tpu_custom_call.1} parent=1 // loop_header
      %s17 = sphi 0, %s21
      %p18 = scmp.ge.s32.totalorder %s17, 4
      %s24 = sphi 0, %s43
      %s25 = sphi 0, %s39
      %s26 = sphi 0, %s35
      %s27 = sphi 0, %s24
      %s28 = sphi 0, %s25
      %s29 = sphi 0, %s26
      %s30 = sphi 0, %s27
      %s31 = sphi 0, %s28
      %s32 = sphi 0, %s29
      %s50 = sphi 0, %s52
      %s53 = sphi 0, %s50
      %s54 = sphi 0, %s53
      %s70 = sphi 0, %s54
      %s80 = sphi 0, %s82
      %s83 = sphi 0, %s80
      %s84 = sphi 0, %s83
      %s100 = sphi 0, %s84
      %s108 = sphi 0, %s110
      %s111 = sphi 0, %s108
      %s112 = sphi 0, %s111
      %s128 = sphi 0, %s112
    $region4: #{tpu_custom_call.1} parent=1 // loop_header_branch
      %20 = sbr.rel (%p18) target = $region8
    $region5: #{tpu_custom_call.1} parent=1 // loop_body
      %s22 = ssub.s32 %s17, 1
      %s23 = ssub.s32 %s17, 2
      %s33 = sadd.s32 1, %s26
      %p34 = scmp.ge.s32.totalorder %s33, 1
      %s35 = scalar_select %p34, 0, %s33
      %s36 = sadd.s32 1, %s25
      %s37 = scalar_select %p34, %s36, %s25
      %p38 = scmp.ge.s32.totalorder %s37, 1
      %s39 = scalar_select %p38, 0, %s37
      %s40 = sadd.s32 1, %s24
      %s41 = scalar_select %p38, %s40, %s24
      %p42 = scmp.ge.s32.totalorder %s41, 2
      %s43 = scalar_select %p42, 0, %s41
      %s44 = sadd.s32 %s25, %s26
      %s45 = sadd.s32 %s39, %s35
      %s46 = ssub.s32 %s24, %s43
      %s47 = ssub.s32 %s44, %s45
      %s48 = sor.u32 %s46, %s47
      %p49 = scmp.eq.s32.totalorder %s48, 0
      %s51 = sadd.s32 %s50, 1
      %s52 = scalar_select %p49, %s50, %s51
      %p55 = pneg %p49
      %p56 = scmp.eq.s32.totalorder %s17, 1
      %p57 = por %p55, %p56
      %p58 = scmp.ne.s32.totalorder %s50, %s53
      %p59 = scmp.eq.s32.totalorder %s17, 0
      %p60 = por %p58, %p59
      %p61 = scmp.ne.s32.totalorder %s50, %s53
      %p62 = scmp.eq.s32.totalorder %s22, 1
      %p63 = por %p61, %p62
      %p64 = scmp.ne.s32.totalorder %s53, %s54
      %p65 = scmp.eq.s32.totalorder %s22, 0
      %p66 = por %p64, %p65
      %p67 = scmp.ne.s32.totalorder %s53, %s54
      %p68 = scmp.eq.s32.totalorder %s23, 1
      %p69 = por %p67, %p68
      %p71 = scmp.ne.s32.totalorder %s54, %s70
      %p72 = scmp.eq.s32.totalorder %s23, 0
      %p73 = por %p71, %p72
      %s74 = sadd.s32 %s25, %s26
      %s75 = sadd.s32 %s39, %s35
      %s76 = ssub.s32 %s24, %s43
      %s77 = ssub.s32 %s74, %s75
      %s78 = sor.u32 %s76, %s77
      %p79 = scmp.eq.s32.totalorder %s78, 0
      %s81 = sadd.s32 %s80, 1
      %s82 = scalar_select %p79, %s80, %s81
      %p85 = pneg %p79
      %p86 = scmp.eq.s32.totalorder %s17, 1
      %p87 = por %p85, %p86
      %p88 = scmp.ne.s32.totalorder %s80, %s83
      %p89 = scmp.eq.s32.totalorder %s17, 0
      %p90 = por %p88, %p89
      %p91 = scmp.ne.s32.totalorder %s80, %s83
      %p92 = scmp.eq.s32.totalorder %s22, 1
      %p93 = por %p91, %p92
      %p94 = scmp.ne.s32.totalorder %s83, %s84
      %p95 = scmp.eq.s32.totalorder %s22, 0
      %p96 = por %p94, %p95
      %p97 = scmp.ne.s32.totalorder %s83, %s84
      %p98 = scmp.eq.s32.totalorder %s23, 1
      %p99 = por %p97, %p98
      %p101 = scmp.ne.s32.totalorder %s84, %s100
      %p102 = scmp.eq.s32.totalorder %s23, 0
      %p103 = por %p101, %p102
      %s104 = ssub.s32 %s24, %s43
      %s105 = ssub.s32 %s25, %s39
      %s106 = sor.u32 %s104, %s105
      %p107 = scmp.eq.s32.totalorder %s106, 0
      %s109 = sadd.s32 %s108, 1
      %s110 = scalar_select %p107, %s108, %s109
      %p113 = pneg %p107
      %p114 = scmp.eq.s32.totalorder %s17, 1
      %p115 = por %p113, %p114
      %p116 = scmp.ne.s32.totalorder %s108, %s111
      %p117 = scmp.eq.s32.totalorder %s17, 0
      %p118 = por %p116, %p117
      %p119 = scmp.ne.s32.totalorder %s108, %s111
      %p120 = scmp.eq.s32.totalorder %s22, 1
      %p121 = por %p119, %p120
      %p122 = scmp.ne.s32.totalorder %s111, %s112
      %p123 = scmp.eq.s32.totalorder %s22, 0
      %p124 = por %p122, %p123
      %p125 = scmp.ne.s32.totalorder %s111, %s112
      %p126 = scmp.eq.s32.totalorder %s23, 1
      %p127 = por %p125, %p126
      %p129 = scmp.ne.s32.totalorder %s112, %s128
      %p130 = scmp.eq.s32.totalorder %s23, 0
      %p131 = por %p129, %p130
      %p132 = scmp.le.s32.totalorder 1, %s17
      %p133 = scmp.lt.s32.totalorder %s17, 3
      %p134 = pnand %p132, %p133
      %p135 = pneg %p134
      // Predicated region
      $region9: #{tpu_custom_call.1} parent=5 // pred_check
        _
      $region10: #{tpu_custom_call.1} parent=5 // pred_check_branch
        %137 = sbr.rel (%p134) target = $region12
      $region11: #{tpu_custom_call.1} parent=5 // pred_region
        %s138 = ssub.s32 %s17, 1
      $region12: #{tpu_custom_call.1} parent=5 // pred_fallthru
        _
      %p139 = scmp.lt.s32.totalorder %s17, 2
      // Predicated region
      $region13: #{tpu_custom_call.1} parent=5 // pred_check
        %p140 = pneg %p139
      $region14: #{tpu_custom_call.1} parent=5 // pred_check_branch
        %142 = sbr.rel (%p140) target = $region16
      $region15: #{tpu_custom_call.1} parent=5 // pred_region
        // Predicated region
        $region17: #{tpu_custom_call.1} parent=15 // pred_check
          %p143 = pneg %p60
        $region18: #{tpu_custom_call.1} parent=15 // pred_check_branch
          %145 = sbr.rel (%p143) target = $region20
        $region19: #{tpu_custom_call.1} parent=15 // pred_region
          %s146 = sand.u32 %s50, 1
          %s147 = scalar_lea.sflag [#allocation5], %s146
          %s148 = sand.u32 %s50, 1
          %s149 = smul.addr %s148, 8
          %s150 = scalar_lea.vmem [#allocation4], %s149
          %s151 = sadd.s32 %s25, %s26
          %s153 = ssub.s32 128, 128
          %154 = vsyncadd %s147, %s153
          %s155 = smul.addr %s24, 4
          %s156 = sadd.s32 %s151, %s155
          %s157 = smul.addr %s156, 32
          %s158 = scalar_lea.hbm %s0, %s157
          %s159 = sshll.u32 %s150, 4
          %s160 = int_to_ptr.vmem [resolvable:$true] %s159
          %165 = dma.hbm_to_vmem [thread:$0]  %s158, 128, %s160, %s147, 32, 32, 2
        $region20: #{tpu_custom_call.1} parent=15 // pred_fallthru
          _
        // Predicated region
        $region21: #{tpu_custom_call.1} parent=15 // pred_check
          %p166 = pneg %p90
        $region22: #{tpu_custom_call.1} parent=15 // pred_check_branch
          %168 = sbr.rel (%p166) target = $region24
        $region23: #{tpu_custom_call.1} parent=15 // pred_region
          %s169 = sand.u32 %s80, 1
          %s170 = scalar_lea.sflag [#allocation8], %s169
          %s171 = sand.u32 %s80, 1
          %s172 = smul.addr %s171, 8
          %s173 = scalar_lea.vmem [#allocation7], %s172
          %s174 = sadd.s32 %s25, %s26
          %s176 = ssub.s32 128, 128
          %177 = vsyncadd %s170, %s176
          %s178 = smul.addr %s24, 4
          %s179 = sadd.s32 %s174, %s178
          %s180 = smul.addr %s179, 32
          %s181 = scalar_lea.hbm %s1, %s180
          %s182 = sshll.u32 %s173, 4
          %s183 = int_to_ptr.vmem [resolvable:$true] %s182
          %188 = dma.hbm_to_vmem [thread:$0]  %s181, 128, %s183, %s170, 32, 32, 2
        $region24: #{tpu_custom_call.1} parent=15 // pred_fallthru
          _
      $region16: #{tpu_custom_call.1} parent=5 // pred_fallthru
        _
      %p189 = scmp.le.s32.totalorder 1, %s17
      %p190 = scmp.lt.s32.totalorder %s17, 3
      %p191 = pnand %p189, %p190
      %p192 = pneg %p191
      // Predicated region
      $region25: #{tpu_custom_call.1} parent=5 // pred_check
        _
      $region26: #{tpu_custom_call.1} parent=5 // pred_check_branch
        %194 = sbr.rel (%p191) target = $region28
      $region27: #{tpu_custom_call.1} parent=5 // pred_region
        %s195 = ssub.s32 %s17, 1
        %s196 = sand.u32 %s53, 1
        %s197 = scalar_lea.sflag [#allocation5], %s196
        %s198 = sand.u32 %s53, 1
        %s199 = smul.addr %s198, 8
        %s200 = scalar_lea.vmem [#allocation4], %s199
        // Predicated region
        $region29: #{tpu_custom_call.1} parent=27 // pred_check
          %p201 = pneg %p66
        $region30: #{tpu_custom_call.1} parent=27 // pred_check_branch
          %203 = sbr.rel (%p201) target = $region32
        $region31: #{tpu_custom_call.1} parent=27 // pred_region
          %204 = dma.done %s197, 128
        $region32: #{tpu_custom_call.1} parent=27 // pred_fallthru
          _
        %s205 = sand.u32 %s83, 1
        %s206 = scalar_lea.sflag [#allocation8], %s205
        %s207 = sand.u32 %s83, 1
        %s208 = smul.addr %s207, 8
        %s209 = scalar_lea.vmem [#allocation7], %s208
        // Predicated region
        $region33: #{tpu_custom_call.1} parent=27 // pred_check
          %p210 = pneg %p96
        $region34: #{tpu_custom_call.1} parent=27 // pred_check_branch
          %212 = sbr.rel (%p210) target = $region36
        $region35: #{tpu_custom_call.1} parent=27 // pred_region
          %213 = dma.done %s206, 128
        $region36: #{tpu_custom_call.1} parent=27 // pred_fallthru
          _
        %s214 = sand.u32 %s53, 1
        %s215 = scalar_lea.sflag [#allocation5], %s214
        %s216 = sand.u32 %s53, 1
        %s217 = smul.addr %s216, 8
        %s218 = scalar_lea.vmem [#allocation4], %s217
        %p219 = pneg %p66
        %p220 = pneg %p63
        %s221 = sand.u32 %s83, 1
        %s222 = scalar_lea.sflag [#allocation8], %s221
        %s223 = sand.u32 %s83, 1
        %s224 = smul.addr %s223, 8
        %s225 = scalar_lea.vmem [#allocation7], %s224
        %p226 = pneg %p96
        %p227 = pneg %p93
        %p228 = pneg %p124
        %p229 = pneg %p121
        %s230 = sand.u32 %s111, 1
        %s231 = scalar_lea.sflag [#allocation6], %s230
        %s232 = sand.u32 %s111, 1
        %s233 = smul.addr %s232, 8
        %s234 = scalar_lea.vmem [#allocation9], %s233
        %s235 = sadd.s32 %s28, %s29
        %s236 = sadd.s32 %s28, %s29
        %p237 = scmp.eq.s32.totalorder %s29, 0
        // Predicated region
        $region37: #{tpu_custom_call.1} parent=27 // pred_check
          %p238 = pneg %p237
        $region38: #{tpu_custom_call.1} parent=27 // pred_check_branch
          %240 = sbr.rel (%p238) target = $region40
        $region39: #{tpu_custom_call.1} parent=27 // pred_region
          %241 = vst [vmem:[#allocation2] sm:$0x3] 0.0
          %242 = vst [vmem:[#allocation3] sm:$0x3] 0.0
        $region40: #{tpu_custom_call.1} parent=27 // pred_fallthru
          _
        %v243 = vld [vmem:[%s200] sm:$0x3]
        %v244 = vld [vmem:[%s200 + $0x2] sm:$0x3]
        %v245 = vld [vmem:[%s200 + $0x4] sm:$0x3]
        %v246 = vld [vmem:[%s200 + $0x6] sm:$0x3]
        %v247 = vld [vmem:[%s209] sm:$0x3]
        %v248 = vld [vmem:[%s209 + $0x2] sm:$0x3]
        %v249 = vld [vmem:[%s209 + $0x4] sm:$0x3]
        %v250 = vld [vmem:[%s209 + $0x6] sm:$0x3]
        %vm251 = vcmp.ne.f32.partialorder %v247, 255.0
        %vm252 = vcmp.ne.f32.partialorder %v248, 255.0
        %vm253 = vcmp.ne.f32.partialorder %v249, 255.0
        %vm254 = vcmp.ne.f32.partialorder %v250, 255.0
        %v255 = vsel %vm251, 1.0, 0.0
        %v256 = vsel %vm252, 1.0, 0.0
        %v257 = vsel %vm253, 1.0, 0.0
        %v258 = vsel %vm254, 1.0, 0.0
        %vm259 = vcmask 1041408
        %v260 = vsel %vm259, %v255, inf
        %v261 = vsel %vm259, %v256, inf
        %v262 = vsel %vm259, %v257, inf
        %v263 = vsel %vm259, %v258, inf
        %v264 = vmin.f32 %v260, %v261
        %v265 = vmin.f32 %v262, %v263
        %v266 = vmin.f32 %v264, %v265
        %vm267 = vcmp.gt.f32.partialorder %v266, 0.0
        %v268 = vsub.f32 %v243, %v247
        %v269 = vsub.f32 %v244, %v248
        %v270 = vsub.f32 %v245, %v249
        %v271 = vsub.f32 %v246, %v250
        %v272 = vand.u32 2147483647, %v268
        %v273 = vand.u32 2147483647, %v269
        %v274 = vand.u32 2147483647, %v270
        %v275 = vand.u32 2147483647, %v271
        %v276 = vsel %vm267, 1, 0
        %vm277 = vcmp.eq.s32.totalorder %v276, 1
        %v278 = vsel %vm277, %v272, 0.0
        %v279 = vsel %vm277, %v273, 0.0
        %v280 = vsel %vm277, %v274, 0.0
        %v281 = vsel %vm277, %v275, 0.0
        %v282 = vld [vmem:[#allocation2] sm:$0x3]
        %v283 = vsel %vm259, %v278, 0.0
        %v284 = vsel %vm259, %v279, 0.0
        %v285 = vadd.f32 %v283, %v284
        %v286 = vsel %vm259, %v280, 0.0
        %v287 = vadd.f32 %v285, %v286
        %v288 = vsel %vm259, %v281, 0.0
        %v289 = vadd.f32 %v287, %v288
        %v290 = vadd.f32 %v282, %v289
        %291 = vst [vmem:[#allocation2] sm:$0x3] %v290
        %v292 = vld [vmem:[#allocation3] sm:$0x3]
        %v293 = vcvt.s32.f32 %v276
        %v294 = vadd.f32 %v292, %v293
        %295 = vst [vmem:[#allocation3] sm:$0x3] %v294
        // Predicated region
        $region41: #{tpu_custom_call.1} parent=27 // pred_check
          %p296 = pneg %p237
        $region42: #{tpu_custom_call.1} parent=27 // pred_check_branch
          %298 = sbr.rel (%p296) target = $region44
        $region43: #{tpu_custom_call.1} parent=27 // pred_region
          %v299 = vlaneseq
          %v300 = vshrl.u32 %v299, 7
          %vm301 = vcmp.eq.s32.totalorder %v300, 0
          %v302 = vld [vmem:[#allocation2] sm:$0x3]
          %v303 = vsel %vm259, %v302, 0.0
          %304 = vadd.xlane.f32.xlu0 %v303
          %v305 = vpop.xlane.xlu0 %304
          %v306 = vrot.slane %v305, 4
          %v307 = vadd.f32 %v305, %v306
          %v308 = vrot.slane %v307, 2
          %v309 = vadd.f32 %v307, %v308
          %v310 = vrot.slane %v309, 1
          %v311 = vadd.f32 %v309, %v310
          %s312 = vtos %v311
          %v313 = vld [vmem:[#allocation3] sm:$0x3]
          %v314 = vsel %vm259, %v313, 0.0
          %315 = vadd.xlane.f32.xlu0 %v314
          %v316 = vpop.xlane.xlu0 %315
          %v317 = vrot.slane %v316, 4
          %v318 = vadd.f32 %v316, %v317
          %v319 = vrot.slane %v318, 2
          %v320 = vadd.f32 %v318, %v319
          %v321 = vrot.slane %v320, 1
          %v322 = vadd.f32 %v320, %v321
          %s323 = vtos %v322
          %v324 = vstv %s312
          %v325 = vstv %s323
          %v326 = vsel %vm301, %v324, %v325
          %327 = vst [vmem:[%s234] sm:$0xff] %v326
        $region44: #{tpu_custom_call.1} parent=27 // pred_fallthru
          _
        %s328 = sand.u32 %s111, 1
        %s329 = scalar_lea.sflag [#allocation6], %s328
        %s330 = sand.u32 %s111, 1
        %s331 = smul.addr %s330, 8
        %s332 = scalar_lea.vmem [#allocation9], %s331
        // Predicated region
        $region45: #{tpu_custom_call.1} parent=27 // pred_check
          %p333 = pneg %p121
        $region46: #{tpu_custom_call.1} parent=27 // pred_check_branch
          %335 = sbr.rel (%p333) target = $region48
        $region47: #{tpu_custom_call.1} parent=27 // pred_region
          %s337 = ssub.s32 128, 128
          %338 = vsyncadd %s329, %s337
          %s339 = sadd.s32 %s28, %s27
          %s340 = smul.addr %s339, 128
          %s341 = scalar_lea.hbm %s2, %s340
          %s343 = sshll.u32 %s332, 4
          %s344 = int_to_ptr.vmem [resolvable:$true] %s343
          %346 = dma.vmem_to_hbm [thread:$0]  %s344, 128, %s341, %s329
        $region48: #{tpu_custom_call.1} parent=27 // pred_fallthru
          _
      $region28: #{tpu_custom_call.1} parent=5 // pred_fallthru
        _
      %p347 = scmp.le.s32.totalorder 2, %s17
      // Predicated region
      $region49: #{tpu_custom_call.1} parent=5 // pred_check
        %p348 = pneg %p347
      $region50: #{tpu_custom_call.1} parent=5 // pred_check_branch
        %350 = sbr.rel (%p348) target = $region52
      $region51: #{tpu_custom_call.1} parent=5 // pred_region
        %s351 = ssub.s32 %s17, 2
        // Predicated region
        $region53: #{tpu_custom_call.1} parent=51 // pred_check
          %p352 = pneg %p127
        $region54: #{tpu_custom_call.1} parent=51 // pred_check_branch
          %354 = sbr.rel (%p352) target = $region56
        $region55: #{tpu_custom_call.1} parent=51 // pred_region
          %s355 = sand.u32 %s112, 1
          %s356 = scalar_lea.sflag [#allocation6], %s355
          %s357 = sand.u32 %s112, 1
          %s358 = smul.addr %s357, 8
          %s359 = scalar_lea.vmem [#allocation9], %s358
          %360 = dma.done %s356, 128
        $region56: #{tpu_custom_call.1} parent=51 // pred_fallthru
          _
      $region52: #{tpu_custom_call.1} parent=5 // pred_fallthru
        _
    $region6: #{tpu_custom_call.1} parent=1 // loop_footer
      %s21 = sadd.s32 1, %s17
    $region7: #{tpu_custom_call.1} parent=1 // loop_footer_branch
      %16 = sbr.rel target = $region3
    $region8: #{tpu_custom_call.1} parent=1 // loop_exit
      _
    %361 = vsyncpa [#allocation5], 1
    %s362 = scalar_lea.sflag [#allocation5], 1
    %363 = vsyncpa %s362, 1
    %364 = vsyncpa [#allocation8], 1
    %s365 = scalar_lea.sflag [#allocation8], 1
    %366 = vsyncpa %s365, 1
    %367 = vsyncpa [#allocation6], 1
    %s368 = scalar_lea.sflag [#allocation6], 1
    %369 = vsyncpa %s368, 1

</llo_original>
